<compile_context>
chip_gen: v7x
topology: tpu7x:2x2x1
jax: 0.10.0
libtpu: 0.0.40
codegen_flags: <defaults>
</compile_context>

<pallas_src>
import functools

import jax
import jax.numpy as jnp
from jax.experimental import pallas as pl
from jax.experimental.pallas import tpu as pltpu


# --------------------------------------------------------------------------
# Kernel
# --------------------------------------------------------------------------
def _self_output_kernel(h_ref, res_ref, wt_ref, b_ref, g_ref, beta_ref, o_ref,
                        *, eps: float, mxu_dtype):
    # h_ref:    (TM, H) tile of dense-input rows (native dtype)
    # res_ref:  (TM, H) matching residual rows
    # wt_ref:   (H_in, H_out) pre-transposed dense weight (standard MK x KN dot)
    # b_ref, g_ref, beta_ref: (1, H)

    # Dense (Linear) on the MXU with an f32 accumulator.  Operands go in at
    # mxu_dtype (native, or bf16 when the caller opts in for f32 inputs).
    x = h_ref[...].astype(mxu_dtype)
    y = jnp.dot(x, wt_ref[...], preferred_element_type=jnp.float32)
    y = y + b_ref[...].astype(jnp.float32)

    # TODO(synk): StableDropout(p) is identity in eval mode; training-time
    # masked dropout (XDropout) is not implemented here.

    # Residual add in f32.
    y = y + res_ref[...].astype(jnp.float32)

    # LayerNorm over the hidden (last) dim -- two-pass centered statistics in
    # f32 (avoids E[x^2]-E[x]^2 cancellation), rsqrt on the EUP.
    inv_h = 1.0 / y.shape[-1]
    mean = jnp.sum(y, axis=-1, keepdims=True) * inv_h
    d = y - mean
    var = jnp.sum(d * d, axis=-1, keepdims=True) * inv_h
    inv = jax.lax.rsqrt(var + eps)                               # EUP
    out = d * inv * g_ref[...].astype(jnp.float32) + beta_ref[...].astype(jnp.float32)
    o_ref[...] = out.astype(o_ref.dtype)


# --------------------------------------------------------------------------
# Tile / VMEM selection helpers
# --------------------------------------------------------------------------
def _align_rows(t: int) -> int:
    if t >= 128:
        return (t // 128) * 128          # keep MXU passes full (v5e 4x128x128)
    return max(8, (t // 8) * 8)          # sublane alignment


def _vmem_bytes_estimate(tm, H, act_bytes, out_bytes, w_bytes):
    act_tiles = 2 * (tm * H * act_bytes) * 2     # h + res, double-buffered
    out_tiles = 2 * (tm * H * out_bytes)         # out, double-buffered
    weight = 2 * (H * H * w_bytes)               # constant block, default 2 bufs
    scratch = 2 * (tm * H * 4)                   # f32 intermediates headroom
    small = 6 * 2 * H * 4                        # bias / gamma / beta
    return act_tiles + out_tiles + weight + scratch + small


def _choose_tile_and_vmem(M, H, act_bytes, out_bytes, w_bytes, row_tile):
    # Detect physical VMEM; be conservative (v7x: 64 MiB) if the query fails.
    try:
        info = pltpu.get_tpu_info()
        vmem_cap = int(getattr(info, "vmem_capacity_bytes", 64 * 1024 * 1024))
    except Exception:
        vmem_cap = 64 * 1024 * 1024
    # ~96 MiB scoped on 128 MiB chips (v5e/v6e), ~48 MiB on v7x.
    budget = min((vmem_cap * 3) // 4, 100 * 1024 * 1024)

    tm = min(row_tile, M)
    if tm == M:
        if M >= 256:
            # At least 2 grid steps so both v7x TensorCores get work.
            tm = _align_rows(pl.cdiv(M, 2))
        # else: single full-extent block (valid regardless of alignment).
    else:
        tm = _align_rows(tm)

    # Shrink the row tile until the double-buffered estimate fits the budget.
    while (tm != M and tm > 8 and
           _vmem_bytes_estimate(tm, H, act_bytes, out_bytes, w_bytes) > budget):
        tm = _align_rows(max(8, tm // 2))

    return tm, int(budget)


# --------------------------------------------------------------------------
# Wrapper
# --------------------------------------------------------------------------
def deberta_v2_self_output(hidden_states, input_tensor, params, *,
                           eps: float = 1e-7, row_tile: int = 512,
                           mxu_dtype=None):
    """hidden_states, input_tensor: [B, S, H]. Returns [B, S, H].

    eps must match config.layer_norm_eps (DeBERTa-v2 default 1e-7).
    mxu_dtype=jnp.bfloat16 casts the matmul operands only (f32 accumulate,
    f32 LayerNorm) -- recommended for f32 checkpoints in production.
    """
    B, S, H = hidden_states.shape
    M = B * S

    h2d = hidden_states.reshape(M, H)
    r2d = input_tensor.reshape(M, H)

    if mxu_dtype is None:
        mxu_dtype = hidden_states.dtype

    # One-time (amortized vs O(M*H^2) matmul) weight transpose + optional cast:
    # the kernel then contracts W's sublane axis -> no per-step relayout.
    wT = jnp.asarray(params["dense_w"]).T.astype(mxu_dtype)      # (H_in, H_out)
    b = params["dense_b"].reshape(1, H)
    gamma = params["ln_gamma"].reshape(1, H)
    beta = params["ln_beta"].reshape(1, H)

    out_dtype = hidden_states.dtype
    act_bytes = jnp.dtype(hidden_states.dtype).itemsize
    out_bytes = jnp.dtype(out_dtype).itemsize
    w_bytes = jnp.dtype(mxu_dtype).itemsize

    tm, vmem_limit = _choose_tile_and_vmem(M, H, act_bytes, out_bytes, w_bytes,
                                           row_tile)
    grid = (pl.cdiv(M, tm),)             # ragged last tile: masked stores, no pad

    flops = 2 * M * H * H + 10 * M * H
    bytes_accessed = ((2 * act_bytes + out_bytes) * M * H
                      + H * H * w_bytes + 3 * H * 4)
    cost = pl.CostEstimate(flops=flops, transcendentals=M,
                           bytes_accessed=bytes_accessed)

    kernel = functools.partial(_self_output_kernel, eps=float(eps),
                               mxu_dtype=mxu_dtype)

    out2d = pl.pallas_call(
        kernel,
        out_shape=jax.ShapeDtypeStruct((M, H), out_dtype),
        grid_spec=pltpu.PrefetchScalarGridSpec(
            num_scalar_prefetch=0,
            grid=grid,
            in_specs=[
                pl.BlockSpec((tm, H), lambda i: (i, 0)),   # dense input rows
                pl.BlockSpec((tm, H), lambda i: (i, 0)),   # residual rows
                pl.BlockSpec((H, H), lambda i: (0, 0)),    # W^T (resident; constant index)
                pl.BlockSpec((1, H), lambda i: (0, 0)),    # bias
                pl.BlockSpec((1, H), lambda i: (0, 0)),    # LN gamma
                pl.BlockSpec((1, H), lambda i: (0, 0)),    # LN beta
            ],
            out_specs=pl.BlockSpec((tm, H), lambda i: (i, 0)),
        ),
        compiler_params=pltpu.CompilerParams(
            dimension_semantics=("parallel",),   # megacore-shard the row axis
            vmem_limit_bytes=vmem_limit,
        ),
        cost_estimate=cost,
    )(h2d, r2d, wT, b, gamma, beta)

    return out2d.reshape(B, S, H)


# --------------------------------------------------------------------------
# Reference + demo
# --------------------------------------------------------------------------
def _reference(hidden_states, input_tensor, params, eps):
    y = jnp.einsum("bsh,oh->bso", hidden_states, params["dense_w"]) + params["dense_b"]
    y = y + input_tensor
    mean = jnp.mean(y, axis=-1, keepdims=True)
    var = jnp.mean((y - mean) ** 2, axis=-1, keepdims=True)
    return (y - mean) / jnp.sqrt(var + eps) * params["ln_gamma"] + params["ln_beta"]


if __name__ == "__main__":
    B, S, H = 2, 8, 32
    eps = 1e-7

    key = jax.random.PRNGKey(0)
    k1, k2, k3, k4 = jax.random.split(key, 4)

    hidden_states = jax.random.normal(k1, (B, S, H), dtype=jnp.float32)
    input_tensor = jax.random.normal(k2, (B, S, H), dtype=jnp.float32)

    # Deterministic parameter init (nn.Linear-style scale); LN gamma=1, beta=0.
    params = {
        "dense_w": jax.random.normal(k3, (H, H), dtype=jnp.float32) * (1.0 / jnp.sqrt(H)),
        "dense_b": jax.random.normal(k4, (H,), dtype=jnp.float32) * 0.01,
        "ln_gamma": jnp.ones((H,), dtype=jnp.float32),
        "ln_beta": jnp.zeros((H,), dtype=jnp.float32),
    }

    ref = _reference(hidden_states, input_tensor, params, eps)

    # 1) Native-f32 path, tight tolerance.
    out = deberta_v2_self_output(hidden_states, input_tensor, params, eps=eps)
    out = jax.block_until_ready(out)
    assert out.shape == (B, S, H)
    assert jnp.allclose(out, ref, atol=1e-4, rtol=1e-4), "mismatch vs reference (f32)"

    # 2) bf16-MXU fast path (production setting for f32 checkpoints); looser
    #    tolerance reflects bf16 operand rounding (accumulate + LN stay f32).
    out_bf = deberta_v2_self_output(hidden_states, input_tensor, params,
                                    eps=eps, mxu_dtype=jnp.bfloat16)
    out_bf = jax.block_until_ready(out_bf)
    assert jnp.allclose(out_bf, ref, atol=5e-2, rtol=5e-2), "mismatch vs reference (bf16 MXU)"

    # 3) Ragged last row tile (M % tm != 0) -- exercises the no-pad path.
    B2, S2 = 2, 9                       # M = 18, row_tile=8 -> tiles 8, 8, 2(ragged)
    hs2 = jax.random.normal(k1, (B2, S2, H), dtype=jnp.float32)
    it2 = jax.random.normal(k2, (B2, S2, H), dtype=jnp.float32)
    out2 = deberta_v2_self_output(hs2, it2, params, eps=eps, row_tile=8)
    out2 = jax.block_until_ready(out2)
    ref2 = _reference(hs2, it2, params, eps)
    assert jnp.allclose(out2, ref2, atol=1e-4, rtol=1e-4), "mismatch vs reference (ragged)"

    print("KERNEL_OK")
</pallas_src>

<mosaic_0001>
module attributes {stable_mosaic.version = 11 : i64} {
  func.func @_self_output_kernel(%arg0: i32, %arg1: memref<16x32xf32, #tpu.memory_space<vmem>>, %arg2: memref<16x32xf32, #tpu.memory_space<vmem>>, %arg3: memref<32x32xf32, #tpu.memory_space<vmem>>, %arg4: memref<1x32xf32, #tpu.memory_space<vmem>>, %arg5: memref<1x32xf32, #tpu.memory_space<vmem>>, %arg6: memref<1x32xf32, #tpu.memory_space<vmem>>, %arg7: memref<16x32xf32, #tpu.memory_space<vmem>>) attributes {dimension_semantics = [#tpu.dimension_semantics<parallel>], iteration_bounds = array<i64: 1>, scalar_prefetch = 0 : i64, scratch_operands = 0 : i64, tpu.core_type = #tpu.core_type<tc>, window_params = [{transform_indices = @transform_0, window_bounds = array<i64: 16, 32>}, {transform_indices = @transform_1, window_bounds = array<i64: 16, 32>}, {pipeline_mode = #tpu.pipeline_mode<synchronous>, transform_indices = @transform_2, window_bounds = array<i64: 32, 32>}, {pipeline_mode = #tpu.pipeline_mode<synchronous>, transform_indices = @transform_3, window_bounds = array<i64: 1, 32>}, {pipeline_mode = #tpu.pipeline_mode<synchronous>, transform_indices = @transform_4, window_bounds = array<i64: 1, 32>}, {pipeline_mode = #tpu.pipeline_mode<synchronous>, transform_indices = @transform_5, window_bounds = array<i64: 1, 32>}, {transform_indices = @transform_6, window_bounds = array<i64: 16, 32>}]} {
    %c0 = arith.constant 0 : index
    %c0_0 = arith.constant 0 : index
    %0 = vector.load %arg1[%c0, %c0_0] : memref<16x32xf32, #tpu.memory_space<vmem>>, vector<16x32xf32>
    %c0_1 = arith.constant 0 : index
    %c0_2 = arith.constant 0 : index
    %1 = vector.load %arg3[%c0_1, %c0_2] : memref<32x32xf32, #tpu.memory_space<vmem>>, vector<32x32xf32>
    %cst = arith.constant dense<0.000000e+00> : vector<16x32xf32>
    %2 = tpu.matmul %0, %1, %cst {dimension_numbers = #tpu.dot_dimension_numbers<[1], [0], [0], [1], [0, 0, 1, 1], [], []>} : vector<16x32xf32>, vector<32x32xf32>, vector<16x32xf32> -> vector<16x32xf32>
    %c0_3 = arith.constant 0 : index
    %c0_4 = arith.constant 0 : index
    %3 = vector.load %arg4[%c0_3, %c0_4] : memref<1x32xf32, #tpu.memory_space<vmem>>, vector<1x32xf32>
    %4 = vector.broadcast %3 : vector<1x32xf32> to vector<16x32xf32>
    %5 = arith.addf %2, %4 : vector<16x32xf32>
    %c0_5 = arith.constant 0 : index
    %c0_6 = arith.constant 0 : index
    %6 = vector.load %arg2[%c0_5, %c0_6] : memref<16x32xf32, #tpu.memory_space<vmem>>, vector<16x32xf32>
    %7 = arith.addf %5, %6 : vector<16x32xf32>
    %cst_7 = arith.constant dense<0.000000e+00> : vector<16xf32>
    %8 = vector.multi_reduction <add>, %7, %cst_7 [1] : vector<16x32xf32> to vector<16xf32>
    %9 = vector.shape_cast %8 : vector<16xf32> to vector<16x1xf32>
    %cst_8 = arith.constant 3.125000e-02 : f32
    %10 = vector.broadcast %cst_8 : f32 to vector<16x1xf32>
    %11 = arith.mulf %9, %10 : vector<16x1xf32>
    %12 = vector.broadcast %11 : vector<16x1xf32> to vector<16x32xf32>
    %13 = arith.subf %7, %12 : vector<16x32xf32>
    %14 = arith.mulf %13, %13 : vector<16x32xf32>
    %cst_9 = arith.constant dense<0.000000e+00> : vector<16xf32>
    %15 = vector.multi_reduction <add>, %14, %cst_9 [1] : vector<16x32xf32> to vector<16xf32>
    %16 = vector.shape_cast %15 : vector<16xf32> to vector<16x1xf32>
    %cst_10 = arith.constant 3.125000e-02 : f32
    %17 = vector.broadcast %cst_10 : f32 to vector<16x1xf32>
    %18 = arith.mulf %16, %17 : vector<16x1xf32>
    %cst_11 = arith.constant 1.000000e-07 : f32
    %19 = vector.broadcast %cst_11 : f32 to vector<16x1xf32>
    %20 = arith.addf %18, %19 : vector<16x1xf32>
    %21 = math.rsqrt %20 : vector<16x1xf32>
    %22 = vector.broadcast %21 : vector<16x1xf32> to vector<16x32xf32>
    %23 = arith.mulf %13, %22 : vector<16x32xf32>
    %c0_12 = arith.constant 0 : index
    %c0_13 = arith.constant 0 : index
    %24 = vector.load %arg5[%c0_12, %c0_13] : memref<1x32xf32, #tpu.memory_space<vmem>>, vector<1x32xf32>
    %25 = vector.broadcast %24 : vector<1x32xf32> to vector<16x32xf32>
    %26 = arith.mulf %23, %25 : vector<16x32xf32>
    %c0_14 = arith.constant 0 : index
    %c0_15 = arith.constant 0 : index
    %27 = vector.load %arg6[%c0_14, %c0_15] : memref<1x32xf32, #tpu.memory_space<vmem>>, vector<1x32xf32>
    %28 = vector.broadcast %27 : vector<1x32xf32> to vector<16x32xf32>
    %29 = arith.addf %26, %28 : vector<16x32xf32>
    %c0_16 = arith.constant 0 : index
    %c0_17 = arith.constant 0 : index
    %30 = vector.load %arg7[%c0_16, %c0_17] : memref<16x32xf32, #tpu.memory_space<vmem>>, vector<16x32xf32>
    tpu.vector_store %arg7[%c0_16, %c0_17], %29 {strides = array<i32>} : memref<16x32xf32, #tpu.memory_space<vmem>>, vector<16x32xf32>,
    return
  }
  func.func @transform_0(%arg0: i32) -> (i32, i32) {
    %c0_i32 = arith.constant 0 : i32
    %c0_i32_0 = arith.constant 0 : i32
    return %arg0, %c0_i32 : i32, i32
  }
  func.func @transform_1(%arg0: i32) -> (i32, i32) {
    %c0_i32 = arith.constant 0 : i32
    %c0_i32_0 = arith.constant 0 : i32
    return %arg0, %c0_i32 : i32, i32
  }
  func.func @transform_2(%arg0: i32) -> (i32, i32) {
    %c0_i32 = arith.constant 0 : i32
    %c0_i32_0 = arith.constant 0 : i32
    %c0_i32_1 = arith.constant 0 : i32
    return %c0_i32, %c0_i32_0 : i32, i32
  }
  func.func @transform_3(%arg0: i32) -> (i32, i32) {
    %c0_i32 = arith.constant 0 : i32
    %c0_i32_0 = arith.constant 0 : i32
    %c0_i32_1 = arith.constant 0 : i32
    return %c0_i32, %c0_i32_0 : i32, i32
  }
  func.func @transform_4(%arg0: i32) -> (i32, i32) {
    %c0_i32 = arith.constant 0 : i32
    %c0_i32_0 = arith.constant 0 : i32
    %c0_i32_1 = arith.constant 0 : i32
    return %c0_i32, %c0_i32_0 : i32, i32
  }
  func.func @transform_5(%arg0: i32) -> (i32, i32) {
    %c0_i32 = arith.constant 0 : i32
    %c0_i32_0 = arith.constant 0 : i32
    %c0_i32_1 = arith.constant 0 : i32
    return %c0_i32, %c0_i32_0 : i32, i32
  }
  func.func @transform_6(%arg0: i32) -> (i32, i32) {
    %c0_i32 = arith.constant 0 : i32
    %c0_i32_0 = arith.constant 0 : i32
    return %arg0, %c0_i32 : i32, i32
  }
}

</mosaic_0001>

<llo_original>
// kernel: tpu_custom_call.1
$region0: #{tpu_custom_call.1}
  #allocation0 [shape = 'u32[]', space=smem, size = 0x4, offset = 0x4, fixed_abs, tag = 'smem constant byte address 0x4 - core index']
  #allocation1 [shape = 'u32[144,128]{1,0:T(1,128)}', space=vmem, size = 0x12000, scoped, tag = 'internal scratch']
  %s0 = inlined_call_operand.hbm [shape: f32[16,32], index: 0, kind: input, shape index: {}]
  %s1 = inlined_call_operand.hbm [shape: f32[16,32], index: 1, kind: input, shape index: {}]
  %s2 = inlined_call_operand.hbm [shape: f32[32,32], index: 2, kind: input, shape index: {}]
  %s3 = inlined_call_operand.vmem [shape: f32[1,32], index: 3, kind: input, shape index: {}]
  %s4 = inlined_call_operand.vmem [shape: f32[1,32], index: 4, kind: input, shape index: {}]
  %s5 = inlined_call_operand.vmem [shape: f32[1,32], index: 5, kind: input, shape index: {}]
  %s6 = inlined_call_operand.hbm [shape: f32[16,32], index: 6, kind: output, shape index: {}]
  %s7 = sld [smem:[#allocation0]]
  $region46: #{tpu_custom_call.1} parent=0
    _
  %s9 = ssub.s32 1, %s7
  %s10 = scalar_select 0, %s9, %s7
  $region1: #{tpu_custom_call.1} parent=0
    #allocation2 [shape = 'u8[8192]{0}', space=vmem, size = 0x2000, scoped, tag = 'input window, operand 0, single buffered']
    #allocation3 [shape = 's32[1]{0}', space=sflag, size = 0x4, scoped, tag = 'scoped memory for tpu_custom_call.1']
    #allocation4 [shape = 's32[1]{0}', space=sflag, size = 0x4, scoped, tag = 'scoped memory for tpu_custom_call.1']
    #allocation5 [shape = 'u8[8192]{0}', space=vmem, size = 0x2000, scoped, tag = 'input window, operand 1, single buffered']
    #allocation6 [shape = 's32[1]{0}', space=sflag, size = 0x4, scoped, tag = 'scoped memory for tpu_custom_call.1']
    #allocation7 [shape = 'u8[16384]{0}', space=vmem, size = 0x4000, scoped, tag = 'input window, operand 2, single buffered']
    #allocation8 [shape = 'u8[8192]{0}', space=vmem, size = 0x2000, scoped, tag = 'output window, operand 0, single buffered']
    %11 = vsyncpa [#allocation3], 0
    %12 = vsyncpa [#allocation6], 0
    %13 = vsyncpa [#allocation4], 0
    // Predicated region
    $region2: #{tpu_custom_call.1} parent=1 // pred_check
      _
    $region3: #{tpu_custom_call.1} parent=1 // pred_check_branch
      %15 = sbr.rel (0) target = $region5
    $region4: #{tpu_custom_call.1} parent=1 // pred_region
      %s17 = ssub.s32 256, 256
      %18 = vsyncadd [#allocation3], %s17
      %s19 = sshll.u32 [#allocation2], 4
      %s20 = int_to_ptr.vmem [resolvable:$true] %s19
      %25 = dma.hbm_to_vmem [thread:$0]  %s0, 256, %s20, [#allocation3], 128, 128, 8
    $region5: #{tpu_custom_call.1} parent=1 // pred_fallthru
      _
    // Predicated region
    $region6: #{tpu_custom_call.1} parent=1 // pred_check
      _
    $region7: #{tpu_custom_call.1} parent=1 // pred_check_branch
      %27 = sbr.rel (0) target = $region9
    $region8: #{tpu_custom_call.1} parent=1 // pred_region
      %s29 = ssub.s32 256, 256
      %30 = vsyncadd [#allocation6], %s29
      %s31 = sshll.u32 [#allocation5], 4
      %s32 = int_to_ptr.vmem [resolvable:$true] %s31
      %37 = dma.hbm_to_vmem [thread:$0]  %s1, 256, %s32, [#allocation6], 128, 128, 8
    $region9: #{tpu_custom_call.1} parent=1 // pred_fallthru
      _
    // Predicated region
    $region10: #{tpu_custom_call.1} parent=1 // pred_check
      _
    $region11: #{tpu_custom_call.1} parent=1 // pred_check_branch
      %39 = sbr.rel (0) target = $region13
    $region12: #{tpu_custom_call.1} parent=1 // pred_region
      %s41 = ssub.s32 512, 512
      %42 = vsyncadd [#allocation6], %s41
      %s43 = sshll.u32 [#allocation7], 4
      %s44 = int_to_ptr.vmem [resolvable:$true] %s43
      %49 = dma.hbm_to_vmem [thread:$0]  %s2, 512, %s44, [#allocation6], 128, 128, 8
    $region13: #{tpu_custom_call.1} parent=1 // pred_fallthru
      _
    // Predicated region
    $region14: #{tpu_custom_call.1} parent=1 // pred_check
      _
    $region15: #{tpu_custom_call.1} parent=1 // pred_check_branch
      %51 = sbr.rel (0) target = $region17
    $region16: #{tpu_custom_call.1} parent=1 // pred_region
      _
    $region17: #{tpu_custom_call.1} parent=1 // pred_fallthru
      _
    // Predicated region
    $region18: #{tpu_custom_call.1} parent=1 // pred_check
      _
    $region19: #{tpu_custom_call.1} parent=1 // pred_check_branch
      %53 = sbr.rel (0) target = $region21
    $region20: #{tpu_custom_call.1} parent=1 // pred_region
      _
    $region21: #{tpu_custom_call.1} parent=1 // pred_fallthru
      _
    // Predicated region
    $region22: #{tpu_custom_call.1} parent=1 // pred_check
      _
    $region23: #{tpu_custom_call.1} parent=1 // pred_check_branch
      %55 = sbr.rel (0) target = $region25
    $region24: #{tpu_custom_call.1} parent=1 // pred_region
      _
    $region25: #{tpu_custom_call.1} parent=1 // pred_fallthru
      _
    // Predicated region
    $region26: #{tpu_custom_call.1} parent=1 // pred_check
      _
    $region27: #{tpu_custom_call.1} parent=1 // pred_check_branch
      %57 = sbr.rel (0) target = $region29
    $region28: #{tpu_custom_call.1} parent=1 // pred_region
      %58 = dma.done [#allocation3], 256
    $region29: #{tpu_custom_call.1} parent=1 // pred_fallthru
      _
    // Predicated region
    $region30: #{tpu_custom_call.1} parent=1 // pred_check
      _
    $region31: #{tpu_custom_call.1} parent=1 // pred_check_branch
      %60 = sbr.rel (0) target = $region33
    $region32: #{tpu_custom_call.1} parent=1 // pred_region
      %61 = dma.done [#allocation6], 256
    $region33: #{tpu_custom_call.1} parent=1 // pred_fallthru
      _
    // Predicated region
    $region34: #{tpu_custom_call.1} parent=1 // pred_check
      _
    $region35: #{tpu_custom_call.1} parent=1 // pred_check_branch
      %63 = sbr.rel (0) target = $region37
    $region36: #{tpu_custom_call.1} parent=1 // pred_region
      %64 = dma.done [#allocation6], 512
    $region37: #{tpu_custom_call.1} parent=1 // pred_fallthru
      _
    %v65 = vld [vmem:[#allocation2] sm:$0xff]
    %v66 = vld [vmem:[#allocation2 + $0x8] sm:$0xff]
    %v67 = vld [vmem:[#allocation7] sm:$0xff]
    %v68 = vld [vmem:[#allocation7 + $0x8] sm:$0xff]
    %v69 = vld [vmem:[#allocation7 + $0x10] sm:$0xff]
    %v70 = vld [vmem:[#allocation7 + $0x18] sm:$0xff]
    %v71 = vld [vmem:[%s3] sm:$0x1]
    %v73 = vlaneseq
    %v74 = vshrl.u32 %v73, 7
    %v75 = vsub.s32 0, %v74
    %v76 = vrot.slane %v71, %v75
    %vm78 = vcmask 261120
    %v80 = vsel %vm78, %v65, 0
    %v83 = vsel %vm78, %v66, 0
    %85 = vmatprep.subr.mxu0 0.0
    %86 = vmatpush1.msra.mxu0 %v67
    %87 = vmatprep.subr.mxu0 0.0
    %88 = vmatpush1.msra.mxu0 %v68
    %89 = vmatprep.subr.mxu0 0.0
    %90 = vmatpush1.msra.mxu0 %v69
    %91 = vmatprep.subr.mxu0 0.0
    %92 = vmatpush1.msra.mxu0 %v70
    %93 = vmatprep.subr.mxu0 0.0
    %94 = vmatpush1.msra.mxu0 0.0
    %95 = vmatprep.subr.mxu0 0.0
    %96 = vmatpush1.msra.mxu0 0.0
    %97 = vmatprep.subr.mxu0 0.0
    %98 = vmatpush1.msra.mxu0 0.0
    %99 = vmatprep.subr.mxu0 0.0
    %100 = vmatpush1.msra.mxu0 0.0
    %101 = vmatprep.subr.mxu0 0.0
    %102 = vmatpush1.msra.mxu0 0.0
    %103 = vmatprep.subr.mxu0 0.0
    %104 = vmatpush1.msra.mxu0 0.0
    %105 = vmatprep.subr.mxu0 0.0
    %106 = vmatpush1.msra.mxu0 0.0
    %107 = vmatprep.subr.mxu0 0.0
    %108 = vmatpush1.msra.mxu0 0.0
    %109 = vmatprep.subr.mxu0 0.0
    %110 = vmatpush1.msra.mxu0 0.0
    %111 = vmatprep.subr.mxu0 0.0
    %112 = vmatpush1.msra.mxu0 0.0
    %113 = vmatprep.subr.mxu0 0.0
    %114 = vmatpush1.msra.mxu0 0.0
    %115 = vmatprep.subr.mxu0 0.0
    %116 = vmatpush1.msra.mxu0 0.0
    %117 = vmatprep.subr.mxu0 0.0
    %118 = vmatpush1.msra.mxu0 0.0
    %119 = vmatprep.subr.mxu0 0.0
    %120 = vmatpush1.msra.mxu0 0.0
    %121 = vmatprep.subr.mxu0 0.0
    %122 = vmatpush1.msra.mxu0 0.0
    %123 = vmatprep.subr.mxu0 0.0
    %124 = vmatpush1.msra.mxu0 0.0
    %125 = vmatprep.subr.mxu0 0.0
    %126 = vmatpush1.msra.mxu0 0.0
    %127 = vmatprep.subr.mxu0 0.0
    %128 = vmatpush1.msra.mxu0 0.0
    %129 = vmatprep.subr.mxu0 0.0
    %130 = vmatpush1.msra.mxu0 0.0
    %131 = vmatprep.subr.mxu0 0.0
    %132 = vmatpush1.msra.mxu0 0.0
    %133 = vmatprep.subr.mxu0 0.0
    %134 = vmatpush1.msra.mxu0 0.0
    %135 = vmatprep.subr.mxu0 0.0
    %136 = vmatpush1.msra.mxu0 0.0
    %137 = vmatprep.subr.mxu0 0.0
    %138 = vmatpush1.msra.mxu0 0.0
    %139 = vmatprep.subr.mxu0 0.0
    %140 = vmatpush1.msra.mxu0 0.0
    %141 = vmatprep.subr.mxu0 0.0
    %142 = vmatpush1.msra.mxu0 0.0
    %143 = vmatprep.subr.mxu0 0.0
    %144 = vmatpush1.msra.mxu0 0.0
    %145 = vmatprep.subr.mxu0 0.0
    %146 = vmatpush1.msra.mxu0 0.0
    %147 = vmatprep.subr.mxu0 0.0
    %148 = vmatpush1.msra.mxu0 0.0
    %149 = vmatprep.mubr.f32.mxu0 0.0
    %150 = vmatmul.mubr.f32.gmra.mrb[0].mxu0 %v80
    %v151 = vpop.f32.mrb[0].mxu0
    %v152 = vadd.f32 %v76, %v151
    %v153 = vpop.f32.mrb[0].mxu0
    %154 = vmatprep.mubr.f32.mxu0 0.0
    %155 = vmatmul.mubr.f32.gmra.mrb[0].mxu0 %v83
    %v156 = vpop.f32.mrb[0].mxu0
    %v157 = vadd.f32 %v76, %v156
    %v158 = vpop.f32.mrb[0].mxu0
    %159 = vdwg.mxu0
    %v160 = vld [vmem:[#allocation5] sm:$0xff]
    %v161 = vld [vmem:[#allocation5 + $0x8] sm:$0xff]
    %v162 = vadd.f32 %v152, %v160
    %v163 = vadd.f32 %v157, %v161
    %v164 = vsel %vm78, %v162, 0.0
    %165 = vadd.xlane.f32.xlu0 %v164
    %v166 = vpop.xlane.xlu0 %165
    %v167 = vsel %vm78, %v163, 0.0
    %168 = vadd.xlane.f32.xlu0 %v167
    %v169 = vpop.xlane.xlu0 %168
    %v170 = vmul.f32 %v166, 0.03125
    %v171 = vmul.f32 %v169, 0.03125
    %v172 = vsub.f32 %v162, %v170
    %v173 = vsub.f32 %v163, %v171
    %v174 = vmul.f32 %v172, %v172
    %v175 = vmul.f32 %v173, %v173
    %v176 = vsel %vm78, %v174, 0.0
    %177 = vadd.xlane.f32.xlu0 %v176
    %v178 = vpop.xlane.xlu0 %177
    %v179 = vsel %vm78, %v175, 0.0
    %180 = vadd.xlane.f32.xlu0 %v179
    %v181 = vpop.xlane.xlu0 %180
    %v182 = vmul.f32 %v178, 0.03125
    %v183 = vmul.f32 %v181, 0.03125
    %v184 = vadd.f32 %v182, 1e-07
    %v185 = vadd.f32 %v183, 1e-07
    %v186 = vrsqrt.pop %v184
    %v187 = vrsqrt.pop %v185
    %v188 = vmul.f32 %v172, %v186
    %v189 = vmul.f32 %v173, %v187
    %v190 = vld [vmem:[%s4] sm:$0x1]
    %v192 = vlaneseq
    %v193 = vshrl.u32 %v192, 7
    %v194 = vsub.s32 0, %v193
    %v195 = vrot.slane %v190, %v194
    %v197 = vmul.f32 %v188, %v195
    %v198 = vmul.f32 %v189, %v195
    %v199 = vld [vmem:[%s5] sm:$0x1]
    %v201 = vlaneseq
    %v202 = vshrl.u32 %v201, 7
    %v203 = vsub.s32 0, %v202
    %v204 = vrot.slane %v199, %v203
    %v206 = vadd.f32 %v197, %v204
    %v207 = vadd.f32 %v198, %v204
    %208 = vst.msk [vmem:[#allocation8] sm:$0xff] %vm78, %v206
    %209 = vst.msk [vmem:[#allocation8 + $0x8] sm:$0xff] %vm78, %v207
    // Predicated region
    $region38: #{tpu_custom_call.1} parent=1 // pred_check
      _
    $region39: #{tpu_custom_call.1} parent=1 // pred_check_branch
      %211 = sbr.rel (0) target = $region41
    $region40: #{tpu_custom_call.1} parent=1 // pred_region
      %s213 = ssub.s32 256, 256
      %214 = vsyncadd [#allocation4], %s213
      %s215 = sshll.u32 [#allocation8], 4
      %s216 = int_to_ptr.vmem [resolvable:$true] %s215
      %221 = dma.vmem_to_hbm [thread:$0]  %s216, 256, %s6, [#allocation4], 128, 128, 8
    $region41: #{tpu_custom_call.1} parent=1 // pred_fallthru
      _
    // Predicated region
    $region42: #{tpu_custom_call.1} parent=1 // pred_check
      _
    $region43: #{tpu_custom_call.1} parent=1 // pred_check_branch
      %223 = sbr.rel (0) target = $region45
    $region44: #{tpu_custom_call.1} parent=1 // pred_region
      %224 = dma.done [#allocation4], 256
    $region45: #{tpu_custom_call.1} parent=1 // pred_fallthru
      _
    %225 = vsyncpa [#allocation3], 1
    %226 = vsyncpa [#allocation6], 1
    %227 = vsyncpa [#allocation4], 1

</llo_original>
